<compile_context>
chip_gen: v7x
topology: tpu7x:2x2x1
jax: 0.10.0
libtpu: 0.0.40
codegen_flags: <defaults>
</compile_context>

<pallas_src>
import jax
import jax.numpy as jnp
import numpy as np
from jax import lax
from jax.experimental import pallas as pl
from jax.experimental.pallas import tpu as pltpu

EPS = 1e-5
SP = 8          # padded spatial-attention channel count (real: 4 hidden, 1 out)
NTAP = 9        # 3x3 taps
CENTER = 4      # tap index of (dy, dx) == (0, 0)
TAPS = [(dy, dx) for dy in (-1, 0, 1) for dx in (-1, 0, 1)]


# ------------------------- packed parameter slab -------------------------

def _slab_layout(C):
    """Static row offsets of every parameter inside the (rows, C) f32 slab."""
    off = {}
    r = 0
    off["w1"] = r;  r += NTAP * SP     # conv1 taps stacked along M     (72, C)
    off["wc1"] = r; r += C             # wc1^T, lanes Cr: are zero       (C, C)
    off["wc2"] = r; r += C             # wc2,   lanes Cr: are zero       (C, C)
    off["w2"] = r;  r += NTAP * SP     # conv2 taps, row-replicated     (72, SP)
    off["bc1"] = r; r += 8             # bc1 row, lanes Cr: zero         (1, C)
    off["bc2"] = r; r += C             # bc2 column in lane 0            (C, 1)
    off["bs1"] = r; r += SP            # folded BN bias column, lane 0  (SP, 1)
    off["bs2"] = r; r += 8             # conv2 bias scalar, lane 0       (1, 1)
    rows = ((r + 7) // 8) * 8
    return off, rows


# ------------------------------ Pallas kernel ------------------------------

def _make_kernel(C, H, W):
    S = H * W
    off, _ = _slab_layout(C)

    def kernel(x_ref, w_ref, m_ref, out_ref):
        x = x_ref[...]                                               # (C, S)

        # ----------------------- channel attention -----------------------
        pooled = jnp.sum(x, axis=-1, keepdims=True) * (1.0 / S)      # (C, 1)
        wc1t = w_ref[off["wc1"]:off["wc1"] + C, :]                   # (C, C)
        wc2 = w_ref[off["wc2"]:off["wc2"] + C, :]                    # (C, C)
        bc1 = w_ref[off["bc1"]:off["bc1"] + 1, :]                    # (1, C)
        bc2 = w_ref[off["bc2"]:off["bc2"] + C, 0:1]                  # (C, 1)
        h = jnp.sum(wc1t * pooled, axis=0, keepdims=True)            # (1, C)
        h = jnp.maximum(h + bc1, 0.0)
        z = jnp.sum(wc2 * h, axis=1, keepdims=True)                  # (C, 1)
        ca = pl.reciprocal(1.0 + jnp.exp(-(z + bc2)), approx=False)  # sigmoid
        x1 = x * ca                                                  # (C, S)

        # ------------- spatial attention: conv1 (+folded BN) + ReLU -------------
        # One stacked matmul over all 9 taps, then roll the OUTPUT per tap and
        # multiply by the precomputed 0/1 boundary mask (which also zeroes the
        # columns that wrapped around during the roll). Center tap needs no
        # roll and no mask.
        w1 = w_ref[off["w1"]:off["w1"] + NTAP * SP, :]               # (72, C)
        bs1 = w_ref[off["bs1"]:off["bs1"] + SP, 0:1]                 # (SP, 1)
        u1 = jnp.dot(w1, x1, preferred_element_type=jnp.float32)     # (72, S)
        acc = u1[CENTER * SP:(CENTER + 1) * SP, :] + bs1             # (SP, S)
        for t, (dy, dx) in enumerate(TAPS):
            if t == CENTER:
                continue
            k = dy * W + dx
            u = pltpu.roll(u1[t * SP:(t + 1) * SP, :], shift=(-k) % S, axis=1)
            acc = acc + u * m_ref[t * SP:(t + 1) * SP, :]
        s = jnp.maximum(acc, 0.0)                                    # (SP, S)

        # ---------------- spatial attention: conv2 + sigmoid ----------------
        w2 = w_ref[off["w2"]:off["w2"] + NTAP * SP, 0:SP]            # (72, SP)
        bs2 = w_ref[off["bs2"]:off["bs2"] + 1, 0:1]                  # (1, 1)
        u2 = jnp.dot(w2, s, preferred_element_type=jnp.float32)      # (72, S)
        z2 = u2[CENTER * SP:(CENTER + 1) * SP, :]                    # (SP, S)
        for t, (dy, dx) in enumerate(TAPS):
            if t == CENTER:
                continue
            k = dy * W + dx
            u = pltpu.roll(u2[t * SP:(t + 1) * SP, :], shift=(-k) % S, axis=1)
            z2 = z2 + u * m_ref[t * SP:(t + 1) * SP, :]
        sa = pl.reciprocal(1.0 + jnp.exp(-(z2[0:1, :] + bs2)), approx=False)

        out_ref[...] = (x1 * sa).astype(out_ref.dtype)               # (C, S)

    return kernel


# ------------------------------ parameter setup ------------------------------

def init_params(key, channels, reduction=4):
    C = channels
    Cr = C // reduction
    ks = jax.random.split(key, 11)
    wc1 = 0.2 * jax.random.normal(ks[0], (Cr, C), jnp.float32)   # Conv2d(C, Cr, 1) + bias
    bc1 = 0.1 * jax.random.normal(ks[1], (Cr,), jnp.float32)
    wc2 = 0.2 * jax.random.normal(ks[2], (C, Cr), jnp.float32)   # Conv2d(Cr, C, 1) + bias
    bc2 = 0.1 * jax.random.normal(ks[3], (C,), jnp.float32)
    ws1 = 0.2 * jax.random.normal(ks[4], (4, C, 3, 3), jnp.float32)  # conv3x3(C, 4), no bias
    g1 = 1.0 + 0.1 * jax.random.normal(ks[5], (4,), jnp.float32)     # BatchNorm2d(4)
    bt1 = 0.1 * jax.random.normal(ks[6], (4,), jnp.float32)
    mu1 = 0.1 * jax.random.normal(ks[7], (4,), jnp.float32)
    var1 = jnp.abs(jax.random.normal(ks[8], (4,), jnp.float32)) + 0.5
    ws2 = 0.2 * jax.random.normal(ks[9], (1, 4, 3, 3), jnp.float32)  # conv3x3(4, 1) + bias
    bs2 = 0.1 * jax.random.normal(ks[10], (1,), jnp.float32)
    return {"ca": (wc1, bc1, wc2, bc2),
            "sa": (ws1, g1, bt1, mu1, var1, ws2, bs2)}


# ------------------------------ wrapper ------------------------------

def _pack_params(params, C, H, W):
    S = H * W
    wc1, bc1, wc2, bc2 = params["ca"]
    ws1, g1, bt1, mu1, var1, ws2, bs2 = params["sa"]
    Cr = wc1.shape[0]
    assert C % 8 == 0 and Cr <= C and SP <= C

    off, rows = _slab_layout(C)

    # Fold BatchNorm (running stats, inference mode) into conv1.
    # TODO(synk): training-mode batch statistics are not implemented.
    scale = g1 / jnp.sqrt(var1 + EPS)
    ws1_f = ws1 * scale[:, None, None, None]                      # (4, C, 3, 3)
    bs1_f = bt1 - mu1 * scale                                     # (4,)

    # conv1: rows [t*SP + o] = ws1_f[o, :, ky, kx] with t = ky*3 + kx.
    w1_taps = jnp.transpose(ws1_f, (2, 3, 0, 1)).reshape(NTAP, 4, C)
    w1_stack = jnp.zeros((NTAP, SP, C), jnp.float32).at[:, :4, :].set(w1_taps)
    w1_stack = w1_stack.reshape(NTAP * SP, C)

    # conv2: the single real output row of tap t, replicated across its 8-row
    # group so every in-kernel slice stays sublane-aligned.
    w2_taps = jnp.transpose(ws2, (2, 3, 0, 1)).reshape(NTAP, 4)       # [t, ci]
    w2_stack = jnp.zeros((NTAP, SP, SP), jnp.float32)
    w2_stack = w2_stack.at[:, :, :4].set(
        jnp.broadcast_to(w2_taps[:, None, :], (NTAP, SP, 4)))
    w2_stack = w2_stack.reshape(NTAP * SP, SP)

    slab = jnp.zeros((rows, C), jnp.float32)
    slab = slab.at[off["w1"]:off["w1"] + NTAP * SP, :].set(w1_stack)
    slab = slab.at[off["wc1"]:off["wc1"] + C, :Cr].set(wc1.T)
    slab = slab.at[off["wc2"]:off["wc2"] + C, :Cr].set(wc2)
    slab = slab.at[off["w2"]:off["w2"] + NTAP * SP, :SP].set(w2_stack)
    slab = slab.at[off["bc1"], :Cr].set(bc1)
    slab = slab.at[off["bc2"]:off["bc2"] + C, 0].set(bc2)
    slab = slab.at[off["bs1"]:off["bs1"] + 4, 0].set(bs1_f)
    slab = slab.at[off["bs2"], 0].set(bs2[0])

    # Boundary masks (compile-time constants). masks[t*SP:(t+1)*SP, p] == 1
    # iff tap (dy, dx) of output position p stays inside the image; this also
    # zeroes every column that wraps around under the circular roll.
    p = np.arange(S)
    r, c = p // W, p % W
    masks = np.zeros((NTAP * SP, S), np.float32)
    for t, (dy, dx) in enumerate(TAPS):
        m = (r + dy >= 0) & (r + dy < H) & (c + dx >= 0) & (c + dx < W)
        masks[t * SP:(t + 1) * SP, :] = m.astype(np.float32)[None, :]

    return slab, jnp.asarray(masks), rows


def csatt_forward(x, params):
    B, C, H, W = x.shape
    S = H * W
    slab, masks, rows = _pack_params(params, C, H, W)

    x_flat = x.reshape(B, C, S)                   # free reshape, no transpose

    out_flat = pl.pallas_call(
        _make_kernel(C, H, W),
        out_shape=jax.ShapeDtypeStruct((B, C, S), jnp.float32),
        grid_spec=pltpu.PrefetchScalarGridSpec(
            num_scalar_prefetch=0,
            grid=(B,),
            in_specs=[
                pl.BlockSpec((None, C, S), lambda b: (b, 0, 0)),   # per-image x
                pl.BlockSpec((rows, C), lambda b: (0, 0)),         # param slab
                pl.BlockSpec((NTAP * SP, S), lambda b: (0, 0)),    # tap masks
            ],
            out_specs=pl.BlockSpec((None, C, S), lambda b: (b, 0, 0)),
        ),
        compiler_params=pltpu.CompilerParams(
            dimension_semantics=("parallel",)),
    )(x_flat, slab, masks)

    return out_flat.reshape(B, C, H, W)


# ------------------------------ pure-JAX reference ------------------------------

def reference(x, params):
    wc1, bc1, wc2, bc2 = params["ca"]
    ws1, g1, bt1, mu1, var1, ws2, bs2 = params["sa"]
    hp = lax.Precision.HIGHEST

    # ChannelAtt
    pooled = x.mean(axis=(2, 3))                                         # (B, C)
    h = jnp.maximum(jnp.matmul(pooled, wc1.T, precision=hp) + bc1[None, :], 0.0)
    ca = jax.nn.sigmoid(jnp.matmul(h, wc2.T, precision=hp) + bc2[None, :])
    x1 = x * ca[:, :, None, None]

    # SpatialAtt
    dn = ("NCHW", "OIHW", "NCHW")
    s = lax.conv_general_dilated(x1, ws1, (1, 1), "SAME",
                                 dimension_numbers=dn, precision=hp)
    scale = g1 / jnp.sqrt(var1 + EPS)
    s = s * scale[None, :, None, None] + (bt1 - mu1 * scale)[None, :, None, None]
    s = jnp.maximum(s, 0.0)
    z = lax.conv_general_dilated(s, ws2, (1, 1), "SAME",
                                 dimension_numbers=dn, precision=hp)
    z = z + bs2[None, :, None, None]
    sa = jax.nn.sigmoid(z)
    return x1 * sa


# ------------------------------ main ------------------------------

if __name__ == "__main__":
    key = jax.random.PRNGKey(0)
    B, C, H, W = 2, 32, 16, 16

    kp, kx = jax.random.split(key)
    params = init_params(kp, C, reduction=4)
    x = jax.random.normal(kx, (B, C, H, W), jnp.float32)

    out = jax.jit(csatt_forward)(x, params)
    out = jax.block_until_ready(out)

    ref = reference(x, params)
    assert out.shape == (B, C, H, W)
    err = float(jnp.max(jnp.abs(out - ref)))
    assert jnp.allclose(out, ref, atol=1e-3, rtol=1e-3), err
    print("KERNEL_OK")
</pallas_src>

<mosaic_0001>
module attributes {stable_mosaic.version = 11 : i64} {
  func.func @kernel(%arg0: i32, %arg1: memref<1x32x256xf32, #tpu.memory_space<vmem>>, %arg2: memref<264x32xf32, #tpu.memory_space<vmem>>, %arg3: memref<72x256xf32, #tpu.memory_space<vmem>>, %arg4: memref<1x32x256xf32, #tpu.memory_space<vmem>>) attributes {dimension_semantics = [#tpu.dimension_semantics<parallel>], iteration_bounds = array<i64: 2>, scalar_prefetch = 0 : i64, scratch_operands = 0 : i64, tpu.core_type = #tpu.core_type<tc>, window_params = [{transform_indices = @transform_0, window_bounds = array<i64: 1, 32, 256>}, {pipeline_mode = #tpu.pipeline_mode<synchronous>, transform_indices = @transform_1, window_bounds = array<i64: 264, 32>}, {pipeline_mode = #tpu.pipeline_mode<synchronous>, transform_indices = @transform_2, window_bounds = array<i64: 72, 256>}, {transform_indices = @transform_3, window_bounds = array<i64: 1, 32, 256>}]} {
    %c0 = arith.constant 0 : index
    %c0_0 = arith.constant 0 : index
    %c0_1 = arith.constant 0 : index
    %0 = vector.load %arg1[%c0, %c0_0, %c0_1] : memref<1x32x256xf32, #tpu.memory_space<vmem>>, vector<1x32x256xf32>
    %1 = vector.shape_cast %0 : vector<1x32x256xf32> to vector<32x256xf32>
    %cst = arith.constant dense<0.000000e+00> : vector<32xf32>
    %2 = vector.multi_reduction <add>, %1, %cst [1] : vector<32x256xf32> to vector<32xf32>
    %3 = vector.shape_cast %2 : vector<32xf32> to vector<32x1xf32>
    %cst_2 = arith.constant 3.906250e-03 : f32
    %4 = vector.broadcast %cst_2 : f32 to vector<32x1xf32>
    %5 = arith.mulf %3, %4 : vector<32x1xf32>
    %c72 = arith.constant 72 : index
    %c0_3 = arith.constant 0 : index
    %6 = vector.load %arg2[%c72, %c0_3] : memref<264x32xf32, #tpu.memory_space<vmem>>, vector<32x32xf32>
    %c104 = arith.constant 104 : index
    %c0_4 = arith.constant 0 : index
    %7 = vector.load %arg2[%c104, %c0_4] : memref<264x32xf32, #tpu.memory_space<vmem>>, vector<32x32xf32>
    %c208 = arith.constant 208 : index
    %c0_5 = arith.constant 0 : index
    %8 = vector.load %arg2[%c208, %c0_5] : memref<264x32xf32, #tpu.memory_space<vmem>>, vector<1x32xf32>
    %c216 = arith.constant 216 : index
    %c0_6 = arith.constant 0 : index
    %9 = vector.load %arg2[%c216, %c0_6] : memref<264x32xf32, #tpu.memory_space<vmem>>, vector<32x1xf32>
    %10 = vector.broadcast %5 : vector<32x1xf32> to vector<32x32xf32>
    %11 = arith.mulf %6, %10 : vector<32x32xf32>
    %cst_7 = arith.constant dense<0.000000e+00> : vector<32xf32>
    %12 = vector.multi_reduction <add>, %11, %cst_7 [0] : vector<32x32xf32> to vector<32xf32>
    %13 = vector.shape_cast %12 : vector<32xf32> to vector<1x32xf32>
    %14 = arith.addf %13, %8 : vector<1x32xf32>
    %cst_8 = arith.constant 0.000000e+00 : f32
    %15 = vector.broadcast %cst_8 : f32 to vector<1x32xf32>
    %16 = arith.maximumf %14, %15 : vector<1x32xf32>
    %17 = vector.broadcast %16 : vector<1x32xf32> to vector<32x32xf32>
    %18 = arith.mulf %7, %17 : vector<32x32xf32>
    %cst_9 = arith.constant dense<0.000000e+00> : vector<32xf32>
    %19 = vector.multi_reduction <add>, %18, %cst_9 [1] : vector<32x32xf32> to vector<32xf32>
    %20 = vector.shape_cast %19 : vector<32xf32> to vector<32x1xf32>
    %21 = arith.addf %20, %9 : vector<32x1xf32>
    %cst_10 = arith.constant 0.000000e+00 : f32
    %22 = vector.broadcast %cst_10 : f32 to vector<32x1xf32>
    %23 = arith.subf %22, %21 : vector<32x1xf32>
    %24 = math.exp %23 : vector<32x1xf32>
    %cst_11 = arith.constant 1.000000e+00 : f32
    %25 = vector.broadcast %cst_11 : f32 to vector<32x1xf32>
    %26 = arith.addf %25, %24 : vector<32x1xf32>
    %27 = tpu.reciprocal %26 : vector<32x1xf32> -> vector<32x1xf32>
    %28 = vector.broadcast %27 : vector<32x1xf32> to vector<32x256xf32>
    %29 = arith.mulf %1, %28 : vector<32x256xf32>
    %c0_12 = arith.constant 0 : index
    %c0_13 = arith.constant 0 : index
    %30 = vector.load %arg2[%c0_12, %c0_13] : memref<264x32xf32, #tpu.memory_space<vmem>>, vector<72x32xf32>
    %c248 = arith.constant 248 : index
    %c0_14 = arith.constant 0 : index
    %31 = vector.load %arg2[%c248, %c0_14] : memref<264x32xf32, #tpu.memory_space<vmem>>, vector<8x1xf32>
    %cst_15 = arith.constant dense<0.000000e+00> : vector<72x256xf32>
    %32 = tpu.matmul %30, %29, %cst_15 {dimension_numbers = #tpu.dot_dimension_numbers<[1], [0], [0], [1], [0, 0, 1, 1], [], []>} : vector<72x32xf32>, vector<32x256xf32>, vector<72x256xf32> -> vector<72x256xf32>
    %33 = vector.extract_strided_slice %32 {offsets = [32, 0], sizes = [8, 256], strides = [1, 1]} : vector<72x256xf32> to vector<8x256xf32>
    %34 = vector.broadcast %31 : vector<8x1xf32> to vector<8x256xf32>
    %35 = arith.addf %33, %34 : vector<8x256xf32>
    %36 = vector.extract_strided_slice %32 {offsets = [0, 0], sizes = [8, 256], strides = [1, 1]} : vector<72x256xf32> to vector<8x256xf32>
    %c17_i32 = arith.constant 17 : i32
    %37 = tpu.dynamic_rotate %36 by %c17_i32 dim 1 : vector<8x256xf32>, i32 -> vector<8x256xf32>
    %c0_16 = arith.constant 0 : index
    %c0_17 = arith.constant 0 : index
    %38 = vector.load %arg3[%c0_16, %c0_17] : memref<72x256xf32, #tpu.memory_space<vmem>>, vector<8x256xf32>
    %39 = arith.mulf %37, %38 : vector<8x256xf32>
    %40 = arith.addf %35, %39 : vector<8x256xf32>
    %41 = vector.extract_strided_slice %32 {offsets = [8, 0], sizes = [8, 256], strides = [1, 1]} : vector<72x256xf32> to vector<8x256xf32>
    %c16_i32 = arith.constant 16 : i32
    %42 = tpu.dynamic_rotate %41 by %c16_i32 dim 1 : vector<8x256xf32>, i32 -> vector<8x256xf32>
    %c8 = arith.constant 8 : index
    %c0_18 = arith.constant 0 : index
    %43 = vector.load %arg3[%c8, %c0_18] : memref<72x256xf32, #tpu.memory_space<vmem>>, vector<8x256xf32>
    %44 = arith.mulf %42, %43 : vector<8x256xf32>
    %45 = arith.addf %40, %44 : vector<8x256xf32>
    %46 = vector.extract_strided_slice %32 {offsets = [16, 0], sizes = [8, 256], strides = [1, 1]} : vector<72x256xf32> to vector<8x256xf32>
    %c15_i32 = arith.constant 15 : i32
    %47 = tpu.dynamic_rotate %46 by %c15_i32 dim 1 : vector<8x256xf32>, i32 -> vector<8x256xf32>
    %c16 = arith.constant 16 : index
    %c0_19 = arith.constant 0 : index
    %48 = vector.load %arg3[%c16, %c0_19] : memref<72x256xf32, #tpu.memory_space<vmem>>, vector<8x256xf32>
    %49 = arith.mulf %47, %48 : vector<8x256xf32>
    %50 = arith.addf %45, %49 : vector<8x256xf32>
    %51 = vector.extract_strided_slice %32 {offsets = [24, 0], sizes = [8, 256], strides = [1, 1]} : vector<72x256xf32> to vector<8x256xf32>
    %c1_i32 = arith.constant 1 : i32
    %52 = tpu.dynamic_rotate %51 by %c1_i32 dim 1 : vector<8x256xf32>, i32 -> vector<8x256xf32>
    %c24 = arith.constant 24 : index
    %c0_20 = arith.constant 0 : index
    %53 = vector.load %arg3[%c24, %c0_20] : memref<72x256xf32, #tpu.memory_space<vmem>>, vector<8x256xf32>
    %54 = arith.mulf %52, %53 : vector<8x256xf32>
    %55 = arith.addf %50, %54 : vector<8x256xf32>
    %56 = vector.extract_strided_slice %32 {offsets = [40, 0], sizes = [8, 256], strides = [1, 1]} : vector<72x256xf32> to vector<8x256xf32>
    %c255_i32 = arith.constant 255 : i32
    %57 = tpu.dynamic_rotate %56 by %c255_i32 dim 1 : vector<8x256xf32>, i32 -> vector<8x256xf32>
    %c40 = arith.constant 40 : index
    %c0_21 = arith.constant 0 : index
    %58 = vector.load %arg3[%c40, %c0_21] : memref<72x256xf32, #tpu.memory_space<vmem>>, vector<8x256xf32>
    %59 = arith.mulf %57, %58 : vector<8x256xf32>
    %60 = arith.addf %55, %59 : vector<8x256xf32>
    %61 = vector.extract_strided_slice %32 {offsets = [48, 0], sizes = [8, 256], strides = [1, 1]} : vector<72x256xf32> to vector<8x256xf32>
    %c241_i32 = arith.constant 241 : i32
    %62 = tpu.dynamic_rotate %61 by %c241_i32 dim 1 : vector<8x256xf32>, i32 -> vector<8x256xf32>
    %c48 = arith.constant 48 : index
    %c0_22 = arith.constant 0 : index
    %63 = vector.load %arg3[%c48, %c0_22] : memref<72x256xf32, #tpu.memory_space<vmem>>, vector<8x256xf32>
    %64 = arith.mulf %62, %63 : vector<8x256xf32>
    %65 = arith.addf %60, %64 : vector<8x256xf32>
    %66 = vector.extract_strided_slice %32 {offsets = [56, 0], sizes = [8, 256], strides = [1, 1]} : vector<72x256xf32> to vector<8x256xf32>
    %c240_i32 = arith.constant 240 : i32
    %67 = tpu.dynamic_rotate %66 by %c240_i32 dim 1 : vector<8x256xf32>, i32 -> vector<8x256xf32>
    %c56 = arith.constant 56 : index
    %c0_23 = arith.constant 0 : index
    %68 = vector.load %arg3[%c56, %c0_23] : memref<72x256xf32, #tpu.memory_space<vmem>>, vector<8x256xf32>
    %69 = arith.mulf %67, %68 : vector<8x256xf32>
    %70 = arith.addf %65, %69 : vector<8x256xf32>
    %71 = vector.extract_strided_slice %32 {offsets = [64, 0], sizes = [8, 256], strides = [1, 1]} : vector<72x256xf32> to vector<8x256xf32>
    %c239_i32 = arith.constant 239 : i32
    %72 = tpu.dynamic_rotate %71 by %c239_i32 dim 1 : vector<8x256xf32>, i32 -> vector<8x256xf32>
    %c64 = arith.constant 64 : index
    %c0_24 = arith.constant 0 : index
    %73 = vector.load %arg3[%c64, %c0_24] : memref<72x256xf32, #tpu.memory_space<vmem>>, vector<8x256xf32>
    %74 = arith.mulf %72, %73 : vector<8x256xf32>
    %75 = arith.addf %70, %74 : vector<8x256xf32>
    %cst_25 = arith.constant 0.000000e+00 : f32
    %76 = vector.broadcast %cst_25 : f32 to vector<8x256xf32>
    %77 = arith.maximumf %75, %76 : vector<8x256xf32>
    %c136 = arith.constant 136 : index
    %c0_26 = arith.constant 0 : index
    %78 = vector.load %arg2[%c136, %c0_26] : memref<264x32xf32, #tpu.memory_space<vmem>>, vector<72x8xf32>
    %c256 = arith.constant 256 : index
    %c0_27 = arith.constant 0 : index
    %79 = vector.load %arg2[%c256, %c0_27] : memref<264x32xf32, #tpu.memory_space<vmem>>, vector<1x1xf32>
    %cst_28 = arith.constant dense<0.000000e+00> : vector<72x256xf32>
    %80 = tpu.matmul %78, %77, %cst_28 {dimension_numbers = #tpu.dot_dimension_numbers<[1], [0], [0], [1], [0, 0, 1, 1], [], []>} : vector<72x8xf32>, vector<8x256xf32>, vector<72x256xf32> -> vector<72x256xf32>
    %81 = vector.extract_strided_slice %80 {offsets = [32, 0], sizes = [8, 256], strides = [1, 1]} : vector<72x256xf32> to vector<8x256xf32>
    %82 = vector.extract_strided_slice %80 {offsets = [0, 0], sizes = [8, 256], strides = [1, 1]} : vector<72x256xf32> to vector<8x256xf32>
    %c17_i32_29 = arith.constant 17 : i32
    %83 = tpu.dynamic_rotate %82 by %c17_i32_29 dim 1 : vector<8x256xf32>, i32 -> vector<8x256xf32>
    %c0_30 = arith.constant 0 : index
    %c0_31 = arith.constant 0 : index
    %84 = vector.load %arg3[%c0_30, %c0_31] : memref<72x256xf32, #tpu.memory_space<vmem>>, vector<8x256xf32>
    %85 = arith.mulf %83, %84 : vector<8x256xf32>
    %86 = arith.addf %81, %85 : vector<8x256xf32>
    %87 = vector.extract_strided_slice %80 {offsets = [8, 0], sizes = [8, 256], strides = [1, 1]} : vector<72x256xf32> to vector<8x256xf32>
    %c16_i32_32 = arith.constant 16 : i32
    %88 = tpu.dynamic_rotate %87 by %c16_i32_32 dim 1 : vector<8x256xf32>, i32 -> vector<8x256xf32>
    %c8_33 = arith.constant 8 : index
    %c0_34 = arith.constant 0 : index
    %89 = vector.load %arg3[%c8_33, %c0_34] : memref<72x256xf32, #tpu.memory_space<vmem>>, vector<8x256xf32>
    %90 = arith.mulf %88, %89 : vector<8x256xf32>
    %91 = arith.addf %86, %90 : vector<8x256xf32>
    %92 = vector.extract_strided_slice %80 {offsets = [16, 0], sizes = [8, 256], strides = [1, 1]} : vector<72x256xf32> to vector<8x256xf32>
    %c15_i32_35 = arith.constant 15 : i32
    %93 = tpu.dynamic_rotate %92 by %c15_i32_35 dim 1 : vector<8x256xf32>, i32 -> vector<8x256xf32>
    %c16_36 = arith.constant 16 : index
    %c0_37 = arith.constant 0 : index
    %94 = vector.load %arg3[%c16_36, %c0_37] : memref<72x256xf32, #tpu.memory_space<vmem>>, vector<8x256xf32>
    %95 = arith.mulf %93, %94 : vector<8x256xf32>
    %96 = arith.addf %91, %95 : vector<8x256xf32>
    %97 = vector.extract_strided_slice %80 {offsets = [24, 0], sizes = [8, 256], strides = [1, 1]} : vector<72x256xf32> to vector<8x256xf32>
    %c1_i32_38 = arith.constant 1 : i32
    %98 = tpu.dynamic_rotate %97 by %c1_i32_38 dim 1 : vector<8x256xf32>, i32 -> vector<8x256xf32>
    %c24_39 = arith.constant 24 : index
    %c0_40 = arith.constant 0 : index
    %99 = vector.load %arg3[%c24_39, %c0_40] : memref<72x256xf32, #tpu.memory_space<vmem>>, vector<8x256xf32>
    %100 = arith.mulf %98, %99 : vector<8x256xf32>
    %101 = arith.addf %96, %100 : vector<8x256xf32>
    %102 = vector.extract_strided_slice %80 {offsets = [40, 0], sizes = [8, 256], strides = [1, 1]} : vector<72x256xf32> to vector<8x256xf32>
    %c255_i32_41 = arith.constant 255 : i32
    %103 = tpu.dynamic_rotate %102 by %c255_i32_41 dim 1 : vector<8x256xf32>, i32 -> vector<8x256xf32>
    %c40_42 = arith.constant 40 : index
    %c0_43 = arith.constant 0 : index
    %104 = vector.load %arg3[%c40_42, %c0_43] : memref<72x256xf32, #tpu.memory_space<vmem>>, vector<8x256xf32>
    %105 = arith.mulf %103, %104 : vector<8x256xf32>
    %106 = arith.addf %101, %105 : vector<8x256xf32>
    %107 = vector.extract_strided_slice %80 {offsets = [48, 0], sizes = [8, 256], strides = [1, 1]} : vector<72x256xf32> to vector<8x256xf32>
    %c241_i32_44 = arith.constant 241 : i32
    %108 = tpu.dynamic_rotate %107 by %c241_i32_44 dim 1 : vector<8x256xf32>, i32 -> vector<8x256xf32>
    %c48_45 = arith.constant 48 : index
    %c0_46 = arith.constant 0 : index
    %109 = vector.load %arg3[%c48_45, %c0_46] : memref<72x256xf32, #tpu.memory_space<vmem>>, vector<8x256xf32>
    %110 = arith.mulf %108, %109 : vector<8x256xf32>
    %111 = arith.addf %106, %110 : vector<8x256xf32>
    %112 = vector.extract_strided_slice %80 {offsets = [56, 0], sizes = [8, 256], strides = [1, 1]} : vector<72x256xf32> to vector<8x256xf32>
    %c240_i32_47 = arith.constant 240 : i32
    %113 = tpu.dynamic_rotate %112 by %c240_i32_47 dim 1 : vector<8x256xf32>, i32 -> vector<8x256xf32>
    %c56_48 = arith.constant 56 : index
    %c0_49 = arith.constant 0 : index
    %114 = vector.load %arg3[%c56_48, %c0_49] : memref<72x256xf32, #tpu.memory_space<vmem>>, vector<8x256xf32>
    %115 = arith.mulf %113, %114 : vector<8x256xf32>
    %116 = arith.addf %111, %115 : vector<8x256xf32>
    %117 = vector.extract_strided_slice %80 {offsets = [64, 0], sizes = [8, 256], strides = [1, 1]} : vector<72x256xf32> to vector<8x256xf32>
    %c239_i32_50 = arith.constant 239 : i32
    %118 = tpu.dynamic_rotate %117 by %c239_i32_50 dim 1 : vector<8x256xf32>, i32 -> vector<8x256xf32>
    %c64_51 = arith.constant 64 : index
    %c0_52 = arith.constant 0 : index
    %119 = vector.load %arg3[%c64_51, %c0_52] : memref<72x256xf32, #tpu.memory_space<vmem>>, vector<8x256xf32>
    %120 = arith.mulf %118, %119 : vector<8x256xf32>
    %121 = arith.addf %116, %120 : vector<8x256xf32>
    %122 = vector.extract_strided_slice %121 {offsets = [0, 0], sizes = [1, 256], strides = [1, 1]} : vector<8x256xf32> to vector<1x256xf32>
    %123 = vector.broadcast %79 : vector<1x1xf32> to vector<1x256xf32>
    %124 = arith.addf %122, %123 : vector<1x256xf32>
    %cst_53 = arith.constant 0.000000e+00 : f32
    %125 = vector.broadcast %cst_53 : f32 to vector<1x256xf32>
    %126 = arith.subf %125, %124 : vector<1x256xf32>
    %127 = math.exp %126 : vector<1x256xf32>
    %cst_54 = arith.constant 1.000000e+00 : f32
    %128 = vector.broadcast %cst_54 : f32 to vector<1x256xf32>
    %129 = arith.addf %128, %127 : vector<1x256xf32>
    %130 = tpu.reciprocal %129 : vector<1x256xf32> -> vector<1x256xf32>
    %131 = vector.broadcast %130 : vector<1x256xf32> to vector<32x256xf32>
    %132 = arith.mulf %29, %131 : vector<32x256xf32>
    %c0_55 = arith.constant 0 : index
    %c0_56 = arith.constant 0 : index
    %c0_57 = arith.constant 0 : index
    %133 = vector.load %arg4[%c0_55, %c0_56, %c0_57] : memref<1x32x256xf32, #tpu.memory_space<vmem>>, vector<1x32x256xf32>
    %134 = vector.shape_cast %133 : vector<1x32x256xf32> to vector<32x256xf32>
    %135 = vector.shape_cast %132 : vector<32x256xf32> to vector<1x32x256xf32>
    tpu.vector_store %arg4[%c0_55, %c0_56, %c0_57], %135 {strides = array<i32>} : memref<1x32x256xf32, #tpu.memory_space<vmem>>, vector<1x32x256xf32>,
    return
  }
  func.func @transform_0(%arg0: i32) -> (i32, i32, i32) {
    %c0_i32 = arith.constant 0 : i32
    %c0_i32_0 = arith.constant 0 : i32
    %c0_i32_1 = arith.constant 0 : i32
    return %arg0, %c0_i32, %c0_i32_0 : i32, i32, i32
  }
  func.func @transform_1(%arg0: i32) -> (i32, i32) {
    %c0_i32 = arith.constant 0 : i32
    %c0_i32_0 = arith.constant 0 : i32
    %c0_i32_1 = arith.constant 0 : i32
    return %c0_i32, %c0_i32_0 : i32, i32
  }
  func.func @transform_2(%arg0: i32) -> (i32, i32) {
    %c0_i32 = arith.constant 0 : i32
    %c0_i32_0 = arith.constant 0 : i32
    %c0_i32_1 = arith.constant 0 : i32
    return %c0_i32, %c0_i32_0 : i32, i32
  }
  func.func @transform_3(%arg0: i32) -> (i32, i32, i32) {
    %c0_i32 = arith.constant 0 : i32
    %c0_i32_0 = arith.constant 0 : i32
    %c0_i32_1 = arith.constant 0 : i32
    return %arg0, %c0_i32, %c0_i32_0 : i32, i32, i32
  }
}

</mosaic_0001>

<llo_original>
// kernel: csatt_forward.1
$region0: #{csatt_forward.1}
  #allocation0 [shape = 'u32[]', space=smem, size = 0x4, offset = 0x4, fixed_abs, tag = 'smem constant byte address 0x4 - core index']
  #allocation1 [shape = 'u32[144,128]{1,0:T(1,128)}', space=vmem, size = 0x12000, scoped, tag = 'internal scratch']
  %s0 = inlined_call_operand.vmem [shape: f32[2,32,256], index: 0, kind: input, shape index: {}]
  %s1 = inlined_call_operand.vmem [shape: f32[264,32], index: 1, kind: input, shape index: {}]
  %s2 = inlined_call_operand.vmem [shape: f32[72,256], index: 2, kind: input, shape index: {}]
  %s3 = inlined_call_operand.vmem [shape: f32[2,32,256], index: 3, kind: output, shape index: {}]
  %s4 = sld [smem:[#allocation0]]
  $region45: #{csatt_forward.1} parent=0
    _
  %s6 = ssub.s32 1, %s4
  %s7 = scalar_select 0, %s6, %s4
  loop: start=0, step=1, limit=4
  $region2: #{csatt_forward.1} parent=0 // loop_pre_header
    _
  $region3: #{csatt_forward.1} parent=0 // loop_header
    %s9 = sphi 0, %s13
    %p10 = scmp.ge.s32.totalorder %s9, 4
    %s19 = sphi 0, %s21
    %s22 = sphi 0, %s19
    %s23 = sphi 0, %s22
    %s39 = sphi 0, %s23
    %s43 = sphi 0, %s43
    %s45 = sphi 0, %s43
    %s46 = sphi 0, %s45
    %s60 = sphi 0, %s46
    %s64 = sphi 0, %s64
    %s66 = sphi 0, %s64
    %s67 = sphi 0, %s66
    %s81 = sphi 0, %s67
    %s87 = sphi 0, %s89
    %s90 = sphi 0, %s87
    %s91 = sphi 0, %s90
    %s107 = sphi 0, %s91
  $region4: #{csatt_forward.1} parent=0 // loop_header_branch
    %12 = sbr.rel (%p10) target = $region8
  $region5: #{csatt_forward.1} parent=0 // loop_body
    %s14 = ssub.s32 %s9, 1
    %s15 = ssub.s32 %s9, 2
    %s16 = sadd.s32 %s9, 1
    %s17 = ssub.s32 %s9, %s16
    %p18 = scmp.eq.s32.totalorder %s17, 0
    %s20 = sadd.s32 %s19, 1
    %s21 = scalar_select %p18, %s19, %s20
    %p24 = pneg %p18
    %p25 = scmp.eq.s32.totalorder %s9, 1
    %p26 = por %p24, %p25
    %p27 = scmp.ne.s32.totalorder %s19, %s22
    %p28 = scmp.eq.s32.totalorder %s9, 0
    %p29 = por %p27, %p28
    %p30 = scmp.ne.s32.totalorder %s19, %s22
    %p31 = scmp.eq.s32.totalorder %s14, 1
    %p32 = por %p30, %p31
    %p33 = scmp.ne.s32.totalorder %s22, %s23
    %p34 = scmp.eq.s32.totalorder %s14, 0
    %p35 = por %p33, %p34
    %p36 = scmp.ne.s32.totalorder %s22, %s23
    %p37 = scmp.eq.s32.totalorder %s15, 1
    %p38 = por %p36, %p37
    %p40 = scmp.ne.s32.totalorder %s23, %s39
    %p41 = scmp.eq.s32.totalorder %s15, 0
    %p42 = por %p40, %p41
    %s44 = sadd.s32 %s43, 1
    %p47 = scmp.eq.s32.totalorder %s9, 1
    %p48 = scmp.ne.s32.totalorder %s43, %s45
    %p49 = scmp.eq.s32.totalorder %s9, 0
    %p50 = por %p48, %p49
    %p51 = scmp.ne.s32.totalorder %s43, %s45
    %p52 = scmp.eq.s32.totalorder %s14, 1
    %p53 = por %p51, %p52
    %p54 = scmp.ne.s32.totalorder %s45, %s46
    %p55 = scmp.eq.s32.totalorder %s14, 0
    %p56 = por %p54, %p55
    %p57 = scmp.ne.s32.totalorder %s45, %s46
    %p58 = scmp.eq.s32.totalorder %s15, 1
    %p59 = por %p57, %p58
    %p61 = scmp.ne.s32.totalorder %s46, %s60
    %p62 = scmp.eq.s32.totalorder %s15, 0
    %p63 = por %p61, %p62
    %s65 = sadd.s32 %s64, 1
    %p68 = scmp.eq.s32.totalorder %s9, 1
    %p69 = scmp.ne.s32.totalorder %s64, %s66
    %p70 = scmp.eq.s32.totalorder %s9, 0
    %p71 = por %p69, %p70
    %p72 = scmp.ne.s32.totalorder %s64, %s66
    %p73 = scmp.eq.s32.totalorder %s14, 1
    %p74 = por %p72, %p73
    %p75 = scmp.ne.s32.totalorder %s66, %s67
    %p76 = scmp.eq.s32.totalorder %s14, 0
    %p77 = por %p75, %p76
    %p78 = scmp.ne.s32.totalorder %s66, %s67
    %p79 = scmp.eq.s32.totalorder %s15, 1
    %p80 = por %p78, %p79
    %p82 = scmp.ne.s32.totalorder %s67, %s81
    %p83 = scmp.eq.s32.totalorder %s15, 0
    %p84 = por %p82, %p83
    %s85 = ssub.s32 %s9, %s16
    %p86 = scmp.eq.s32.totalorder %s85, 0
    %s88 = sadd.s32 %s87, 1
    %s89 = scalar_select %p86, %s87, %s88
    %p92 = pneg %p86
    %p93 = scmp.eq.s32.totalorder %s9, 1
    %p94 = por %p92, %p93
    %p95 = scmp.ne.s32.totalorder %s87, %s90
    %p96 = scmp.eq.s32.totalorder %s9, 0
    %p97 = por %p95, %p96
    %p98 = scmp.ne.s32.totalorder %s87, %s90
    %p99 = scmp.eq.s32.totalorder %s14, 1
    %p100 = por %p98, %p99
    %p101 = scmp.ne.s32.totalorder %s90, %s91
    %p102 = scmp.eq.s32.totalorder %s14, 0
    %p103 = por %p101, %p102
    %p104 = scmp.ne.s32.totalorder %s90, %s91
    %p105 = scmp.eq.s32.totalorder %s15, 1
    %p106 = por %p104, %p105
    %p108 = scmp.ne.s32.totalorder %s91, %s107
    %p109 = scmp.eq.s32.totalorder %s15, 0
    %p110 = por %p108, %p109
    %p111 = scmp.le.s32.totalorder 1, %s9
    %p112 = scmp.lt.s32.totalorder %s9, 3
    %p113 = pnand %p111, %p112
    %p114 = pneg %p113
    // Predicated region
    $region9: #{csatt_forward.1} parent=5 // pred_check
      _
    $region10: #{csatt_forward.1} parent=5 // pred_check_branch
      %116 = sbr.rel (%p113) target = $region12
    $region11: #{csatt_forward.1} parent=5 // pred_region
      %s117 = ssub.s32 %s9, 1
      // Predicated region
      $region13: #{csatt_forward.1} parent=11 // pred_check
        %p118 = pneg %p56
      $region14: #{csatt_forward.1} parent=11 // pred_check_branch
        %120 = sbr.rel (%p118) target = $region16
      $region15: #{csatt_forward.1} parent=11 // pred_region
        _
      $region16: #{csatt_forward.1} parent=11 // pred_fallthru
        _
      // Predicated region
      $region17: #{csatt_forward.1} parent=11 // pred_check
        %p121 = pneg %p77
      $region18: #{csatt_forward.1} parent=11 // pred_check_branch
        %123 = sbr.rel (%p121) target = $region20
      $region19: #{csatt_forward.1} parent=11 // pred_region
        _
      $region20: #{csatt_forward.1} parent=11 // pred_fallthru
        _
    $region12: #{csatt_forward.1} parent=5 // pred_fallthru
      _
    %p124 = scmp.lt.s32.totalorder %s9, 2
    // Predicated region
    $region21: #{csatt_forward.1} parent=5 // pred_check
      %p125 = pneg %p124
    $region22: #{csatt_forward.1} parent=5 // pred_check_branch
      %127 = sbr.rel (%p125) target = $region24
    $region23: #{csatt_forward.1} parent=5 // pred_region
      // Predicated region
      $region25: #{csatt_forward.1} parent=23 // pred_check
        %p128 = pneg %p29
      $region26: #{csatt_forward.1} parent=23 // pred_check_branch
        %130 = sbr.rel (%p128) target = $region28
      $region27: #{csatt_forward.1} parent=23 // pred_region
        %p131 = scmp.lt.s32.totalorder %s9, 1
        %s132 = scalar_select %p131, %s9, 1
        %s133 = smul.addr %s132, 8
        %s134 = smul.addr %s133, 8
        %s135 = scalar_lea.vmem %s0, %s134
      $region28: #{csatt_forward.1} parent=23 // pred_fallthru
        _
    $region24: #{csatt_forward.1} parent=5 // pred_fallthru
      _
    %p136 = scmp.le.s32.totalorder 1, %s9
    %p137 = scmp.lt.s32.totalorder %s9, 3
    %p138 = pnand %p136, %p137
    %p139 = pneg %p138
    // Predicated region
    $region29: #{csatt_forward.1} parent=5 // pred_check
      _
    $region30: #{csatt_forward.1} parent=5 // pred_check_branch
      %141 = sbr.rel (%p138) target = $region32
    $region31: #{csatt_forward.1} parent=5 // pred_region
      %s142 = ssub.s32 %s9, 1
      %p143 = scmp.lt.s32.totalorder %s14, 1
      %s144 = scalar_select %p143, %s14, 1
      %s145 = smul.addr %s144, 8
      %s146 = smul.addr %s145, 8
      %s147 = scalar_lea.vmem %s0, %s146
      %p148 = pneg %p35
      %p149 = pneg %p32
      %p150 = pneg %p56
      %p151 = pneg %p53
      %p152 = pneg %p77
      %p153 = pneg %p74
      %p154 = pneg %p103
      %p155 = pneg %p100
      %p156 = scmp.lt.s32.totalorder %s14, 1
      %s157 = scalar_select %p156, %s14, 1
      %s158 = smul.addr %s157, 8
      %s159 = smul.addr %s158, 8
      %s160 = scalar_lea.vmem %s3, %s159
      %p161 = scmp.lt.s32.totalorder %s14, 1
      %s162 = scalar_select %p161, %s14, 1
      %s163 = smul.addr %s162, 8
      %s164 = smul.addr %s163, 8
      %s165 = scalar_lea.vmem %s0, %s164
      %p166 = scmp.lt.s32.totalorder %s14, 1
      %s167 = scalar_select %p166, %s14, 1
      %s168 = smul.addr %s167, 8
      %s169 = smul.addr %s168, 8
      %s170 = scalar_lea.vmem %s3, %s169
      %v171 = vld [vmem:[%s165] sm:$0xff]
      %v172 = vld [vmem:[%s165 + $0x8] sm:$0xff]
      %v173 = vld [vmem:[%s165 + $0x10] sm:$0xff]
      %v174 = vld [vmem:[%s165 + $0x18] sm:$0xff]
      %v175 = vld [vmem:[%s165 + $0x20] sm:$0xff]
      %v176 = vld [vmem:[%s165 + $0x28] sm:$0xff]
      %v177 = vld [vmem:[%s165 + $0x30] sm:$0xff]
      %v178 = vld [vmem:[%s165 + $0x38] sm:$0xff]
      %v179 = vadd.f32 %v171, %v172
      %180 = vadd.xlane.f32.xlu0 %v179
      %v181 = vpop.xlane.xlu0 %180
      %v182 = vadd.f32 %v173, %v174
      %183 = vadd.xlane.f32.xlu0 %v182
      %v184 = vpop.xlane.xlu0 %183
      %v185 = vadd.f32 %v175, %v176
      %186 = vadd.xlane.f32.xlu0 %v185
      %v187 = vpop.xlane.xlu0 %186
      %v188 = vadd.f32 %v177, %v178
      %189 = vadd.xlane.f32.xlu0 %v188
      %v190 = vpop.xlane.xlu0 %189
      %v191 = vmul.f32 %v181, 0.00390625
      %v192 = vmul.f32 %v184, 0.00390625
      %v193 = vmul.f32 %v187, 0.00390625
      %v194 = vmul.f32 %v190, 0.00390625
      %v195 = vld [vmem:[%s1 + $0x48] sm:$0xff]
      %v196 = vld [vmem:[%s1 + $0x50] sm:$0xff]
      %v197 = vld [vmem:[%s1 + $0x58] sm:$0xff]
      %v198 = vld [vmem:[%s1 + $0x60] sm:$0xff]
      %v199 = vld [vmem:[%s1 + $0x68] sm:$0xff]
      %v200 = vld [vmem:[%s1 + $0x70] sm:$0xff]
      %v201 = vld [vmem:[%s1 + $0x78] sm:$0xff]
      %v202 = vld [vmem:[%s1 + $0x80] sm:$0xff]
      %v203 = vld [vmem:[%s1 + $0xd0] sm:$0x1]
      %v204 = vld [vmem:[%s1 + $0xd8] sm:$0xff]
      %v205 = vld [vmem:[%s1 + $0xe0] sm:$0xff]
      %v206 = vld [vmem:[%s1 + $0xe8] sm:$0xff]
      %v207 = vld [vmem:[%s1 + $0xf0] sm:$0xff]
      %v208 = vmul.f32 %v195, %v191
      %v209 = vmul.f32 %v196, %v192
      %v210 = vmul.f32 %v197, %v193
      %v211 = vmul.f32 %v198, %v194
      %vm212 = vcmask 261120
      %v213 = vsel %vm212, %v208, 0.0
      %v214 = vsel %vm212, %v209, 0.0
      %v215 = vadd.f32 %v213, %v214
      %v216 = vsel %vm212, %v210, 0.0
      %v217 = vadd.f32 %v215, %v216
      %v218 = vsel %vm212, %v211, 0.0
      %v219 = vadd.f32 %v217, %v218
      %v220 = vrot.slane %v219, 4
      %v221 = vadd.f32 %v219, %v220
      %v222 = vrot.slane %v221, 2
      %v223 = vadd.f32 %v221, %v222
      %v224 = vrot.slane %v223, 1
      %v225 = vadd.f32 %v223, %v224
      %v226 = vadd.f32 %v225, %v203
      %v227 = vmax.f32 %v226, 0.0
      %v228 = vlaneseq
      %v229 = vshrl.u32 %v228, 7
      %v230 = vsub.s32 0, %v229
      %v231 = vrot.slane %v227, %v230
      %v232 = vmul.f32 %v199, %v231
      %v233 = vmul.f32 %v200, %v231
      %v234 = vmul.f32 %v201, %v231
      %v235 = vmul.f32 %v202, %v231
      %v236 = vsel %vm212, %v232, 0.0
      %237 = vadd.xlane.f32.xlu0 %v236
      %v238 = vpop.xlane.xlu0 %237
      %v239 = vsel %vm212, %v233, 0.0
      %240 = vadd.xlane.f32.xlu0 %v239
      %v241 = vpop.xlane.xlu0 %240
      %v242 = vsel %vm212, %v234, 0.0
      %243 = vadd.xlane.f32.xlu0 %v242
      %v244 = vpop.xlane.xlu0 %243
      %v245 = vsel %vm212, %v235, 0.0
      %246 = vadd.xlane.f32.xlu0 %v245
      %v247 = vpop.xlane.xlu0 %246
      %v248 = vadd.f32 %v238, %v204
      %v249 = vadd.f32 %v241, %v205
      %v250 = vadd.f32 %v244, %v206
      %v251 = vadd.f32 %v247, %v207
      %v252 = vsub.f32 0.0, %v248
      %v253 = vsub.f32 0.0, %v249
      %v254 = vsub.f32 0.0, %v250
      %v255 = vsub.f32 0.0, %v251
      %v256 = vmul.f32 %v252, 1.442695
      %v257 = vpow.pop %v256
      %v258 = vmul.f32 %v253, 1.442695
      %v259 = vpow.pop %v258
      %v260 = vmul.f32 %v254, 1.442695
      %v261 = vpow.pop %v260
      %v262 = vmul.f32 %v255, 1.442695
      %v263 = vpow.pop %v262
      %v264 = vadd.f32 %v257, 1.0
      %v265 = vadd.f32 %v259, 1.0
      %v266 = vadd.f32 %v261, 1.0
      %v267 = vadd.f32 %v263, 1.0
      %v268 = vrcp.pop %v264
      %v269 = vrcp.pop %v265
      %v270 = vrcp.pop %v266
      %v271 = vrcp.pop %v267
      %273 = vset.pattern.permute.xlu0 0
      %274 = vperm.xlu0 %273, %v268
      %v275 = vpop.permute.xlu0 %274
      %278 = vset.pattern.permute.xlu0 0
      %279 = vperm.xlu0 %278, %v269
      %v280 = vpop.permute.xlu0 %279
      %283 = vset.pattern.permute.xlu0 0
      %284 = vperm.xlu0 %283, %v270
      %v285 = vpop.permute.xlu0 %284
      %288 = vset.pattern.permute.xlu0 0
      %289 = vperm.xlu0 %288, %v271
      %v290 = vpop.permute.xlu0 %289
      %v292 = vmul.f32 %v171, %v275
      %v293 = vmul.f32 %v172, %v275
      %v294 = vmul.f32 %v173, %v280
      %v295 = vmul.f32 %v174, %v280
      %v296 = vmul.f32 %v175, %v285
      %v297 = vmul.f32 %v176, %v285
      %v298 = vmul.f32 %v177, %v290
      %v299 = vmul.f32 %v178, %v290
      %v300 = vld [vmem:[%s1] sm:$0xff]
      %v301 = vld [vmem:[%s1 + $0x8] sm:$0xff]
      %v302 = vld [vmem:[%s1 + $0x10] sm:$0xff]
      %v303 = vld [vmem:[%s1 + $0x18] sm:$0xff]
      %v304 = vld [vmem:[%s1 + $0x20] sm:$0xff]
      %v305 = vld [vmem:[%s1 + $0x28] sm:$0xff]
      %v306 = vld [vmem:[%s1 + $0x30] sm:$0xff]
      %v307 = vld [vmem:[%s1 + $0x38] sm:$0xff]
      %v308 = vld [vmem:[%s1 + $0x40] sm:$0xff]
      %v309 = vld [vmem:[%s1 + $0xf8] sm:$0xff]
      %v311 = vsel %vm212, %v300, 0
      %v314 = vsel %vm212, %v301, 0
      %v317 = vsel %vm212, %v302, 0
      %v320 = vsel %vm212, %v303, 0
      %v323 = vsel %vm212, %v304, 0
      %v326 = vsel %vm212, %v305, 0
      %v329 = vsel %vm212, %v306, 0
      %v332 = vsel %vm212, %v307, 0
      %v335 = vsel %vm212, %v308, 0
      %337 = vmatprep.subr.mxu0 %v293
      %338 = vmatpush1.msra.mxu0 %v292
      %339 = vmatprep.subr.mxu0 %v295
      %340 = vmatpush1.msra.mxu0 %v294
      %341 = vmatprep.subr.mxu0 %v297
      %342 = vmatpush1.msra.mxu0 %v296
      %343 = vmatprep.subr.mxu0 %v299
      %344 = vmatpush1.msra.mxu0 %v298
      %345 = vmatprep.subr.mxu0 0.0
      %346 = vmatpush1.msra.mxu0 0.0
      %347 = vmatprep.subr.mxu0 0.0
      %348 = vmatpush1.msra.mxu0 0.0
      %349 = vmatprep.subr.mxu0 0.0
      %350 = vmatpush1.msra.mxu0 0.0
      %351 = vmatprep.subr.mxu0 0.0
      %352 = vmatpush1.msra.mxu0 0.0
      %353 = vmatprep.subr.mxu0 0.0
      %354 = vmatpush1.msra.mxu0 0.0
      %355 = vmatprep.subr.mxu0 0.0
      %356 = vmatpush1.msra.mxu0 0.0
      %357 = vmatprep.subr.mxu0 0.0
      %358 = vmatpush1.msra.mxu0 0.0
      %359 = vmatprep.subr.mxu0 0.0
      %360 = vmatpush1.msra.mxu0 0.0
      %361 = vmatprep.subr.mxu0 0.0
      %362 = vmatpush1.msra.mxu0 0.0
      %363 = vmatprep.subr.mxu0 0.0
      %364 = vmatpush1.msra.mxu0 0.0
      %365 = vmatprep.subr.mxu0 0.0
      %366 = vmatpush1.msra.mxu0 0.0
      %367 = vmatprep.subr.mxu0 0.0
      %368 = vmatpush1.msra.mxu0 0.0
      %369 = vmatprep.subr.mxu0 0.0
      %370 = vmatpush1.msra.mxu0 0.0
      %371 = vmatprep.subr.mxu0 0.0
      %372 = vmatpush1.msra.mxu0 0.0
      %373 = vmatprep.subr.mxu0 0.0
      %374 = vmatpush1.msra.mxu0 0.0
      %375 = vmatprep.subr.mxu0 0.0
      %376 = vmatpush1.msra.mxu0 0.0
      %377 = vmatprep.subr.mxu0 0.0
      %378 = vmatpush1.msra.mxu0 0.0
      %379 = vmatprep.subr.mxu0 0.0
      %380 = vmatpush1.msra.mxu0 0.0
      %381 = vmatprep.subr.mxu0 0.0
      %382 = vmatpush1.msra.mxu0 0.0
      %383 = vmatprep.subr.mxu0 0.0
      %384 = vmatpush1.msra.mxu0 0.0
      %385 = vmatprep.subr.mxu0 0.0
      %386 = vmatpush1.msra.mxu0 0.0
      %387 = vmatprep.subr.mxu0 0.0
      %388 = vmatpush1.msra.mxu0 0.0
      %389 = vmatprep.subr.mxu0 0.0
      %390 = vmatpush1.msra.mxu0 0.0
      %391 = vmatprep.subr.mxu0 0.0
      %392 = vmatpush1.msra.mxu0 0.0
      %393 = vmatprep.subr.mxu0 0.0
      %394 = vmatpush1.msra.mxu0 0.0
      %395 = vmatprep.subr.mxu0 0.0
      %396 = vmatpush1.msra.mxu0 0.0
      %397 = vmatprep.subr.mxu0 0.0
      %398 = vmatpush1.msra.mxu0 0.0
      %399 = vmatprep.subr.mxu0 0.0
      %400 = vmatpush1.msra.mxu0 0.0
      %401 = vmatprep.mubr.f32.mxu0 0.0
      %402 = vmatmul.mubr.f32.gmra.mrb[0].mxu0 %v311
      %v403 = vpop.f32.mrb[0].mxu0
      %v404 = vadd.f32 0.0, %v403
      %v405 = vpop.f32.mrb[0].mxu0
      %v406 = vadd.f32 0.0, %v405
      %407 = vmatprep.mubr.f32.mxu0 0.0
      %408 = vmatmul.mubr.f32.gmra.mrb[0].mxu0 %v314
      %v409 = vpop.f32.mrb[0].mxu0
      %v410 = vadd.f32 0.0, %v409
      %v411 = vpop.f32.mrb[0].mxu0
      %v412 = vadd.f32 0.0, %v411
      %413 = vmatprep.mubr.f32.mxu0 0.0
      %414 = vmatmul.mubr.f32.gmra.mrb[0].mxu0 %v317
      %v415 = vpop.f32.mrb[0].mxu0
      %v416 = vadd.f32 0.0, %v415
      %v417 = vpop.f32.mrb[0].mxu0
      %v418 = vadd.f32 0.0, %v417
      %419 = vmatprep.mubr.f32.mxu0 0.0
      %420 = vmatmul.mubr.f32.gmra.mrb[0].mxu0 %v320
      %v421 = vpop.f32.mrb[0].mxu0
      %v422 = vadd.f32 0.0, %v421
      %v423 = vpop.f32.mrb[0].mxu0
      %v424 = vadd.f32 0.0, %v423
      %425 = vmatprep.mubr.f32.mxu0 0.0
      %426 = vmatmul.mubr.f32.gmra.mrb[0].mxu0 %v323
      %v427 = vpop.f32.mrb[0].mxu0
      %v428 = vadd.f32 0.0, %v427
      %v429 = vpop.f32.mrb[0].mxu0
      %v430 = vadd.f32 0.0, %v429
      %431 = vmatprep.mubr.f32.mxu0 0.0
      %432 = vmatmul.mubr.f32.gmra.mrb[0].mxu0 %v326
      %v433 = vpop.f32.mrb[0].mxu0
      %v434 = vadd.f32 0.0, %v433
      %v435 = vpop.f32.mrb[0].mxu0
      %v436 = vadd.f32 0.0, %v435
      %437 = vmatprep.mubr.f32.mxu0 0.0
      %438 = vmatmul.mubr.f32.gmra.mrb[0].mxu0 %v329
      %v439 = vpop.f32.mrb[0].mxu0
      %v440 = vadd.f32 0.0, %v439
      %v441 = vpop.f32.mrb[0].mxu0
      %v442 = vadd.f32 0.0, %v441
      %443 = vmatprep.mubr.f32.mxu0 0.0
      %444 = vmatmul.mubr.f32.gmra.mrb[0].mxu0 %v332
      %v445 = vpop.f32.mrb[0].mxu0
      %v446 = vadd.f32 0.0, %v445
      %v447 = vpop.f32.mrb[0].mxu0
      %v448 = vadd.f32 0.0, %v447
      %449 = vmatprep.mubr.f32.mxu0 0.0
      %450 = vmatmul.mubr.f32.gmra.mrb[0].mxu0 %v335
      %v451 = vpop.f32.mrb[0].mxu0
      %v452 = vadd.f32 0.0, %v451
      %v453 = vpop.f32.mrb[0].mxu0
      %v454 = vadd.f32 0.0, %v453
      %455 = vdwg.mxu0
      %457 = vset.pattern.permute.xlu0 0
      %458 = vperm.xlu0 %457, %v309
      %v459 = vpop.permute.xlu0 %458
      %v461 = vadd.f32 %v428, %v459
      %v462 = vadd.f32 %v430, %v459
      %463 = vrot.lane.b32.xlu0 %v404, 17
      %v464 = vpop.permute.xlu0 %463
      %465 = vrot.lane.b32.xlu0 %v406, 17
      %v466 = vpop.permute.xlu0 %465
      %v467 = vlaneseq
      %v468 = vand.u32 %v467, 127
      %vm469 = vcmp.lt.s32.totalorder %v468, 17
      %v470 = vsel %vm469, %v464, %v466
      %v471 = vsel %vm469, %v466, %v464
      %v472 = vld [vmem:[%s2] sm:$0xff]
      %v473 = vld [vmem:[%s2 + $0x8] sm:$0xff]
      %v474 = vmul.f32 %v471, %v472
      %v475 = vmul.f32 %v470, %v473
      %v476 = vadd.f32 %v461, %v474
      %v477 = vadd.f32 %v462, %v475
      %478 = vrot.lane.b32.xlu0 %v410, 16
      %v479 = vpop.permute.xlu0 %478
      %480 = vrot.lane.b32.xlu0 %v412, 16
      %v481 = vpop.permute.xlu0 %480
      %vm482 = vcmp.lt.s32.totalorder %v468, 16
      %v483 = vsel %vm482, %v479, %v481
      %v484 = vsel %vm482, %v481, %v479
      %v485 = vld [vmem:[%s2 + $0x10] sm:$0xff]
      %v486 = vld [vmem:[%s2 + $0x18] sm:$0xff]
      %v487 = vmul.f32 %v484, %v485
      %v488 = vmul.f32 %v483, %v486
      %v489 = vadd.f32 %v476, %v487
      %v490 = vadd.f32 %v477, %v488
      %491 = vrot.lane.b32.xlu0 %v416, 15
      %v492 = vpop.permute.xlu0 %491
      %493 = vrot.lane.b32.xlu0 %v418, 15
      %v494 = vpop.permute.xlu0 %493
      %vm495 = vcmp.lt.s32.totalorder %v468, 15
      %v496 = vsel %vm495, %v492, %v494
      %v497 = vsel %vm495, %v494, %v492
      %v498 = vld [vmem:[%s2 + $0x20] sm:$0xff]
      %v499 = vld [vmem:[%s2 + $0x28] sm:$0xff]
      %v500 = vmul.f32 %v497, %v498
      %v501 = vmul.f32 %v496, %v499
      %v502 = vadd.f32 %v489, %v500
      %v503 = vadd.f32 %v490, %v501
      %504 = vrot.lane.b32.xlu0 %v422, 1
      %v505 = vpop.permute.xlu0 %504
      %506 = vrot.lane.b32.xlu0 %v424, 1
      %v507 = vpop.permute.xlu0 %506
      %vm508 = vcmp.lt.s32.totalorder %v468, 1
      %v509 = vsel %vm508, %v505, %v507
      %v510 = vsel %vm508, %v507, %v505
      %v511 = vld [vmem:[%s2 + $0x30] sm:$0xff]
      %v512 = vld [vmem:[%s2 + $0x38] sm:$0xff]
      %v513 = vmul.f32 %v510, %v511
      %v514 = vmul.f32 %v509, %v512
      %v515 = vadd.f32 %v502, %v513
      %v516 = vadd.f32 %v503, %v514
      %517 = vrot.lane.b32.xlu0 %v434, 127
      %v518 = vpop.permute.xlu0 %517
      %519 = vrot.lane.b32.xlu0 %v436, 127
      %v520 = vpop.permute.xlu0 %519
      %vm521 = vcmp.lt.s32.totalorder %v468, 127
      %v522 = vsel %vm521, %v518, %v520
      %v523 = vsel %vm521, %v520, %v518
      %v524 = vld [vmem:[%s2 + $0x50] sm:$0xff]
      %v525 = vld [vmem:[%s2 + $0x58] sm:$0xff]
      %v526 = vmul.f32 %v522, %v524
      %v527 = vmul.f32 %v523, %v525
      %v528 = vadd.f32 %v515, %v526
      %v529 = vadd.f32 %v516, %v527
      %530 = vrot.lane.b32.xlu0 %v440, 113
      %v531 = vpop.permute.xlu0 %530
      %532 = vrot.lane.b32.xlu0 %v442, 113
      %v533 = vpop.permute.xlu0 %532
      %vm534 = vcmp.lt.s32.totalorder %v468, 113
      %v535 = vsel %vm534, %v531, %v533
      %v536 = vsel %vm534, %v533, %v531
      %v537 = vld [vmem:[%s2 + $0x60] sm:$0xff]
      %v538 = vld [vmem:[%s2 + $0x68] sm:$0xff]
      %v539 = vmul.f32 %v535, %v537
      %v540 = vmul.f32 %v536, %v538
      %v541 = vadd.f32 %v528, %v539
      %v542 = vadd.f32 %v529, %v540
      %543 = vrot.lane.b32.xlu0 %v446, 112
      %v544 = vpop.permute.xlu0 %543
      %545 = vrot.lane.b32.xlu0 %v448, 112
      %v546 = vpop.permute.xlu0 %545
      %vm547 = vcmp.lt.s32.totalorder %v468, 112
      %v548 = vsel %vm547, %v544, %v546
      %v549 = vsel %vm547, %v546, %v544
      %v550 = vld [vmem:[%s2 + $0x70] sm:$0xff]
      %v551 = vld [vmem:[%s2 + $0x78] sm:$0xff]
      %v552 = vmul.f32 %v548, %v550
      %v553 = vmul.f32 %v549, %v551
      %v554 = vadd.f32 %v541, %v552
      %v555 = vadd.f32 %v542, %v553
      %556 = vrot.lane.b32.xlu0 %v452, 111
      %v557 = vpop.permute.xlu0 %556
      %558 = vrot.lane.b32.xlu0 %v454, 111
      %v559 = vpop.permute.xlu0 %558
      %vm560 = vcmp.lt.s32.totalorder %v468, 111
      %v561 = vsel %vm560, %v557, %v559
      %v562 = vsel %vm560, %v559, %v557
      %v563 = vld [vmem:[%s2 + $0x80] sm:$0xff]
      %v564 = vld [vmem:[%s2 + $0x88] sm:$0xff]
      %v565 = vmul.f32 %v561, %v563
      %v566 = vmul.f32 %v562, %v564
      %v567 = vadd.f32 %v554, %v565
      %v568 = vadd.f32 %v555, %v566
      %v569 = vmax.f32 %v567, 0.0
      %v570 = vmax.f32 %v568, 0.0
      %v571 = vld [vmem:[%s1 + $0x88] sm:$0xff]
      %v572 = vld [vmem:[%s1 + $0x90] sm:$0xff]
      %v573 = vld [vmem:[%s1 + $0x98] sm:$0xff]
      %v574 = vld [vmem:[%s1 + $0xa0] sm:$0xff]
      %v575 = vld [vmem:[%s1 + $0xa8] sm:$0xff]
      %v576 = vld [vmem:[%s1 + $0xb0] sm:$0xff]
      %v577 = vld [vmem:[%s1 + $0xb8] sm:$0xff]
      %v578 = vld [vmem:[%s1 + $0xc0] sm:$0xff]
      %v579 = vld [vmem:[%s1 + $0xc8] sm:$0xff]
      %v580 = vld [vmem:[%s1 + $0x100] sm:$0x1]
      %vm581 = vcmask 64512
      %v583 = vsel %vm581, %v571, 0
      %v586 = vsel %vm581, %v572, 0
      %v589 = vsel %vm581, %v573, 0
      %v592 = vsel %vm581, %v574, 0
      %v595 = vsel %vm581, %v575, 0
      %v598 = vsel %vm581, %v576, 0
      %v601 = vsel %vm581, %v577, 0
      %v604 = vsel %vm581, %v578, 0
      %v607 = vsel %vm581, %v579, 0
      %609 = vmatprep.subr.mxu0 %v570
      %610 = vmatpush1.msra.mxu0 %v569
      %611 = vmatprep.subr.mxu0 0.0
      %612 = vmatpush1.msra.mxu0 0.0
      %613 = vmatprep.subr.mxu0 0.0
      %614 = vmatpush1.msra.mxu0 0.0
      %615 = vmatprep.subr.mxu0 0.0
      %616 = vmatpush1.msra.mxu0 0.0
      %617 = vmatprep.subr.mxu0 0.0
      %618 = vmatpush1.msra.mxu0 0.0
      %619 = vmatprep.subr.mxu0 0.0
      %620 = vmatpush1.msra.mxu0 0.0
      %621 = vmatprep.subr.mxu0 0.0
      %622 = vmatpush1.msra.mxu0 0.0
      %623 = vmatprep.subr.mxu0 0.0
      %624 = vmatpush1.msra.mxu0 0.0
      %625 = vmatprep.subr.mxu0 0.0
      %626 = vmatpush1.msra.mxu0 0.0
      %627 = vmatprep.subr.mxu0 0.0
      %628 = vmatpush1.msra.mxu0 0.0
      %629 = vmatprep.subr.mxu0 0.0
      %630 = vmatpush1.msra.mxu0 0.0
      %631 = vmatprep.subr.mxu0 0.0
      %632 = vmatpush1.msra.mxu0 0.0
      %633 = vmatprep.subr.mxu0 0.0
      %634 = vmatpush1.msra.mxu0 0.0
      %635 = vmatprep.subr.mxu0 0.0
      %636 = vmatpush1.msra.mxu0 0.0
      %637 = vmatprep.subr.mxu0 0.0
      %638 = vmatpush1.msra.mxu0 0.0
      %639 = vmatprep.subr.mxu0 0.0
      %640 = vmatpush1.msra.mxu0 0.0
      %641 = vmatprep.subr.mxu0 0.0
      %642 = vmatpush1.msra.mxu0 0.0
      %643 = vmatprep.subr.mxu0 0.0
      %644 = vmatpush1.msra.mxu0 0.0
      %645 = vmatprep.subr.mxu0 0.0
      %646 = vmatpush1.msra.mxu0 0.0
      %647 = vmatprep.subr.mxu0 0.0
      %648 = vmatpush1.msra.mxu0 0.0
      %649 = vmatprep.subr.mxu0 0.0
      %650 = vmatpush1.msra.mxu0 0.0
      %651 = vmatprep.subr.mxu0 0.0
      %652 = vmatpush1.msra.mxu0 0.0
      %653 = vmatprep.subr.mxu0 0.0
      %654 = vmatpush1.msra.mxu0 0.0
      %655 = vmatprep.subr.mxu0 0.0
      %656 = vmatpush1.msra.mxu0 0.0
      %657 = vmatprep.subr.mxu0 0.0
      %658 = vmatpush1.msra.mxu0 0.0
      %659 = vmatprep.subr.mxu0 0.0
      %660 = vmatpush1.msra.mxu0 0.0
      %661 = vmatprep.subr.mxu0 0.0
      %662 = vmatpush1.msra.mxu0 0.0
      %663 = vmatprep.subr.mxu0 0.0
      %664 = vmatpush1.msra.mxu0 0.0
      %665 = vmatprep.subr.mxu0 0.0
      %666 = vmatpush1.msra.mxu0 0.0
      %667 = vmatprep.subr.mxu0 0.0
      %668 = vmatpush1.msra.mxu0 0.0
      %669 = vmatprep.subr.mxu0 0.0
      %670 = vmatpush1.msra.mxu0 0.0
      %671 = vmatprep.subr.mxu0 0.0
      %672 = vmatpush1.msra.mxu0 0.0
      %673 = vmatprep.mubr.f32.mxu0 0.0
      %674 = vmatmul.mubr.f32.gmra.mrb[0].mxu0 %v583
      %v675 = vpop.f32.mrb[0].mxu0
      %v676 = vadd.f32 0.0, %v675
      %v677 = vpop.f32.mrb[0].mxu0
      %v678 = vadd.f32 0.0, %v677
      %679 = vmatprep.mubr.f32.mxu0 0.0
      %680 = vmatmul.mubr.f32.gmra.mrb[0].mxu0 %v586
      %v681 = vpop.f32.mrb[0].mxu0
      %v682 = vadd.f32 0.0, %v681
      %v683 = vpop.f32.mrb[0].mxu0
      %v684 = vadd.f32 0.0, %v683
      %685 = vmatprep.mubr.f32.mxu0 0.0
      %686 = vmatmul.mubr.f32.gmra.mrb[0].mxu0 %v589
      %v687 = vpop.f32.mrb[0].mxu0
      %v688 = vadd.f32 0.0, %v687
      %v689 = vpop.f32.mrb[0].mxu0
      %v690 = vadd.f32 0.0, %v689
      %691 = vmatprep.mubr.f32.mxu0 0.0
      %692 = vmatmul.mubr.f32.gmra.mrb[0].mxu0 %v592
      %v693 = vpop.f32.mrb[0].mxu0
      %v694 = vadd.f32 0.0, %v693
      %v695 = vpop.f32.mrb[0].mxu0
      %v696 = vadd.f32 0.0, %v695
      %697 = vmatprep.mubr.f32.mxu0 0.0
      %698 = vmatmul.mubr.f32.gmra.mrb[0].mxu0 %v595
      %v699 = vpop.f32.mrb[0].mxu0
      %v700 = vadd.f32 0.0, %v699
      %v701 = vpop.f32.mrb[0].mxu0
      %v702 = vadd.f32 0.0, %v701
      %703 = vmatprep.mubr.f32.mxu0 0.0
      %704 = vmatmul.mubr.f32.gmra.mrb[0].mxu0 %v598
      %v705 = vpop.f32.mrb[0].mxu0
      %v706 = vadd.f32 0.0, %v705
      %v707 = vpop.f32.mrb[0].mxu0
      %v708 = vadd.f32 0.0, %v707
      %709 = vmatprep.mubr.f32.mxu0 0.0
      %710 = vmatmul.mubr.f32.gmra.mrb[0].mxu0 %v601
      %v711 = vpop.f32.mrb[0].mxu0
      %v712 = vadd.f32 0.0, %v711
      %v713 = vpop.f32.mrb[0].mxu0
      %v714 = vadd.f32 0.0, %v713
      %715 = vmatprep.mubr.f32.mxu0 0.0
      %716 = vmatmul.mubr.f32.gmra.mrb[0].mxu0 %v604
      %v717 = vpop.f32.mrb[0].mxu0
      %v718 = vadd.f32 0.0, %v717
      %v719 = vpop.f32.mrb[0].mxu0
      %v720 = vadd.f32 0.0, %v719
      %721 = vmatprep.mubr.f32.mxu0 0.0
      %722 = vmatmul.mubr.f32.gmra.mrb[0].mxu0 %v607
      %v723 = vpop.f32.mrb[0].mxu0
      %v724 = vadd.f32 0.0, %v723
      %v725 = vpop.f32.mrb[0].mxu0
      %v726 = vadd.f32 0.0, %v725
      %727 = vdwg.mxu0
      %728 = vrot.lane.b32.xlu0 %v676, 17
      %v729 = vpop.permute.xlu0 %728
      %730 = vrot.lane.b32.xlu0 %v678, 17
      %v731 = vpop.permute.xlu0 %730
      %v732 = vsel %vm469, %v729, %v731
      %v733 = vsel %vm469, %v731, %v729
      %v734 = vmul.f32 %v733, %v472
      %v735 = vmul.f32 %v732, %v473
      %v736 = vadd.f32 %v700, %v734
      %v737 = vadd.f32 %v702, %v735
      %738 = vrot.lane.b32.xlu0 %v682, 16
      %v739 = vpop.permute.xlu0 %738
      %740 = vrot.lane.b32.xlu0 %v684, 16
      %v741 = vpop.permute.xlu0 %740
      %v742 = vsel %vm482, %v739, %v741
      %v743 = vsel %vm482, %v741, %v739
      %v744 = vmul.f32 %v743, %v485
      %v745 = vmul.f32 %v742, %v486
      %v746 = vadd.f32 %v736, %v744
      %v747 = vadd.f32 %v737, %v745
      %748 = vrot.lane.b32.xlu0 %v688, 15
      %v749 = vpop.permute.xlu0 %748
      %750 = vrot.lane.b32.xlu0 %v690, 15
      %v751 = vpop.permute.xlu0 %750
      %v752 = vsel %vm495, %v749, %v751
      %v753 = vsel %vm495, %v751, %v749
      %v754 = vmul.f32 %v753, %v498
      %v755 = vmul.f32 %v752, %v499
      %v756 = vadd.f32 %v746, %v754
      %v757 = vadd.f32 %v747, %v755
      %758 = vrot.lane.b32.xlu0 %v694, 1
      %v759 = vpop.permute.xlu0 %758
      %760 = vrot.lane.b32.xlu0 %v696, 1
      %v761 = vpop.permute.xlu0 %760
      %v762 = vsel %vm508, %v759, %v761
      %v763 = vsel %vm508, %v761, %v759
      %v764 = vmul.f32 %v763, %v511
      %v765 = vmul.f32 %v762, %v512
      %v766 = vadd.f32 %v756, %v764
      %v767 = vadd.f32 %v757, %v765
      %768 = vrot.lane.b32.xlu0 %v706, 127
      %v769 = vpop.permute.xlu0 %768
      %770 = vrot.lane.b32.xlu0 %v708, 127
      %v771 = vpop.permute.xlu0 %770
      %v772 = vsel %vm521, %v769, %v771
      %v773 = vsel %vm521, %v771, %v769
      %v774 = vmul.f32 %v772, %v524
      %v775 = vmul.f32 %v773, %v525
      %v776 = vadd.f32 %v766, %v774
      %v777 = vadd.f32 %v767, %v775
      %778 = vrot.lane.b32.xlu0 %v712, 113
      %v779 = vpop.permute.xlu0 %778
      %780 = vrot.lane.b32.xlu0 %v714, 113
      %v781 = vpop.permute.xlu0 %780
      %v782 = vsel %vm534, %v779, %v781
      %v783 = vsel %vm534, %v781, %v779
      %v784 = vmul.f32 %v782, %v537
      %v785 = vmul.f32 %v783, %v538
      %v786 = vadd.f32 %v776, %v784
      %v787 = vadd.f32 %v777, %v785
      %788 = vrot.lane.b32.xlu0 %v718, 112
      %v789 = vpop.permute.xlu0 %788
      %790 = vrot.lane.b32.xlu0 %v720, 112
      %v791 = vpop.permute.xlu0 %790
      %v792 = vsel %vm547, %v789, %v791
      %v793 = vsel %vm547, %v791, %v789
      %v794 = vmul.f32 %v792, %v550
      %v795 = vmul.f32 %v793, %v551
      %v796 = vadd.f32 %v786, %v794
      %v797 = vadd.f32 %v787, %v795
      %798 = vrot.lane.b32.xlu0 %v724, 111
      %v799 = vpop.permute.xlu0 %798
      %800 = vrot.lane.b32.xlu0 %v726, 111
      %v801 = vpop.permute.xlu0 %800
      %v802 = vsel %vm560, %v799, %v801
      %v803 = vsel %vm560, %v801, %v799
      %v804 = vmul.f32 %v802, %v563
      %v805 = vmul.f32 %v803, %v564
      %v806 = vadd.f32 %v796, %v804
      %v807 = vadd.f32 %v797, %v805
      %809 = vset.pattern.permute.xlu0 0
      %810 = vperm.xlu0 %809, %v580
      %v811 = vpop.permute.xlu0 %810
      %v813 = vadd.f32 %v806, %v811
      %v814 = vadd.f32 %v807, %v811
      %v815 = vsub.f32 0.0, %v813
      %v816 = vsub.f32 0.0, %v814
      %v817 = vmul.f32 %v815, 1.442695
      %v818 = vpow.pop %v817
      %v819 = vmul.f32 %v816, 1.442695
      %v820 = vpow.pop %v819
      %v821 = vadd.f32 %v818, 1.0
      %v822 = vadd.f32 %v820, 1.0
      %v823 = vrcp.pop %v821
      %v824 = vrcp.pop %v822
      %v825 = vlaneseq
      %v826 = vshrl.u32 %v825, 7
      %v827 = vsub.s32 0, %v826
      %v828 = vrot.slane %v823, %v827
      %v829 = vlaneseq
      %v830 = vshrl.u32 %v829, 7
      %v831 = vsub.s32 0, %v830
      %v832 = vrot.slane %v824, %v831
      %v833 = vmul.f32 %v292, %v828
      %v834 = vmul.f32 %v293, %v832
      %v835 = vmul.f32 %v294, %v828
      %v836 = vmul.f32 %v295, %v832
      %v837 = vmul.f32 %v296, %v828
      %v838 = vmul.f32 %v297, %v832
      %v839 = vmul.f32 %v298, %v828
      %v840 = vmul.f32 %v299, %v832
      %841 = vst [vmem:[%s170] sm:$0xff] %v833
      %842 = vst [vmem:[%s170 + $0x8] sm:$0xff] %v834
      %843 = vst [vmem:[%s170 + $0x10] sm:$0xff] %v835
      %844 = vst [vmem:[%s170 + $0x18] sm:$0xff] %v836
      %845 = vst [vmem:[%s170 + $0x20] sm:$0xff] %v837
      %846 = vst [vmem:[%s170 + $0x28] sm:$0xff] %v838
      %847 = vst [vmem:[%s170 + $0x30] sm:$0xff] %v839
      %848 = vst [vmem:[%s170 + $0x38] sm:$0xff] %v840
      %p849 = scmp.lt.s32.totalorder %s14, 1
      %s850 = scalar_select %p849, %s14, 1
      %s851 = smul.addr %s850, 8
      %s852 = smul.addr %s851, 8
      %s853 = scalar_lea.vmem %s3, %s852
      // Predicated region
      $region33: #{csatt_forward.1} parent=31 // pred_check
        %p854 = pneg %p100
      $region34: #{csatt_forward.1} parent=31 // pred_check_branch
        %856 = sbr.rel (%p854) target = $region36
      $region35: #{csatt_forward.1} parent=31 // pred_region
        _
      $region36: #{csatt_forward.1} parent=31 // pred_fallthru
        _
    $region32: #{csatt_forward.1} parent=5 // pred_fallthru
      _
    %p857 = scmp.le.s32.totalorder 2, %s9
    // Predicated region
    $region37: #{csatt_forward.1} parent=5 // pred_check
      %p858 = pneg %p857
    $region38: #{csatt_forward.1} parent=5 // pred_check_branch
      %860 = sbr.rel (%p858) target = $region40
    $region39: #{csatt_forward.1} parent=5 // pred_region
      %s861 = ssub.s32 %s9, 2
      // Predicated region
      $region41: #{csatt_forward.1} parent=39 // pred_check
        %p862 = pneg %p106
      $region42: #{csatt_forward.1} parent=39 // pred_check_branch
        %864 = sbr.rel (%p862) target = $region44
      $region43: #{csatt_forward.1} parent=39 // pred_region
        %p865 = scmp.lt.s32.totalorder %s15, 1
        %s866 = scalar_select %p865, %s15, 1
        %s867 = smul.addr %s866, 8
        %s868 = smul.addr %s867, 8
        %s869 = scalar_lea.vmem %s3, %s868
      $region44: #{csatt_forward.1} parent=39 // pred_fallthru
        _
    $region40: #{csatt_forward.1} parent=5 // pred_fallthru
      _
  $region6: #{csatt_forward.1} parent=0 // loop_footer
    %s13 = sadd.s32 1, %s9
  $region7: #{csatt_forward.1} parent=0 // loop_footer_branch
    %8 = sbr.rel target = $region3
  $region8: #{csatt_forward.1} parent=0 // loop_exit
    _

</llo_original>
